<compile_context>
chip_gen: v7x
topology: tpu7x:2x2x1
jax: 0.10.0
libtpu: 0.0.40
codegen_flags: <defaults>
</compile_context>

<pallas_src>
import jax
import jax.numpy as jnp
from jax.experimental import pallas as pl
from jax.experimental.pallas import tpu as pltpu

_MiB = 1024 * 1024
_LANE = 128
_L_CAP = 16384  # max lane-block width (largest multiple of 128 we ever pick)


def _normalize_kernel(x_ref, scale_ref, bias_ref, o_ref):
    # x_ref:     (r_block, l_block)  rows = flattened (n, c), lanes = H*W pixels
    # scale_ref: (r_block, 1)        per-row 1/std        (f32)
    # bias_ref:  (r_block, 1)        per-row -mean/std    (f32)
    x = x_ref[...].astype(jnp.float32)
    o_ref[...] = (x * scale_ref[...] + bias_ref[...]).astype(o_ref.dtype)


def _chip_config():
    """Generation-aware budgets: (block_bytes, vmem_limit_bytes, ensure_two_blocks)."""
    vmem = None
    try:
        vmem = getattr(pltpu.get_tpu_info(), "vmem_capacity_bytes", None)
    except Exception:
        vmem = None
    if vmem is None:
        try:
            kind = jax.devices()[0].device_kind.lower()
        except Exception:
            kind = ""
        vmem = 64 * _MiB if "7" in kind else 128 * _MiB
    if vmem >= 100 * _MiB:
        # v5e / v6e: 128 MiB VMEM per TC, single TensorCore per chip.
        return 8 * _MiB, 64 * _MiB, False
    # v7x-like: 64 MiB VMEM per TC, 2 TensorCores per chip -> want >=2 parallel blocks.
    return 4 * _MiB, 32 * _MiB, True


def _pick_blocks(R, L, in_itemsize, out_itemsize, block_bytes, ensure_two):
    """Pick (r_block, l_block): lane-dense, VMEM-budgeted, dtype-aware sublanes."""
    # Sub-32-bit dtypes pack along sublanes: 8 rows for f32, 16 for bf16, 32 for int8.
    sub = max(8, 32 // max(1, in_itemsize))
    per_elem = max(in_itemsize, out_itemsize)        # budget covers in+out streams
    budget_elems = max(_LANE * sub, block_bytes // per_elem)

    # Grow the lane block first (biggest single lever: wide unmasked stores).
    max_l = max(_LANE, min(_L_CAP, (budget_elems // sub) // _LANE * _LANE))
    if L % _LANE == 0:
        l_block = min(L, max_l)
    elif L * sub <= budget_elems:
        l_block = L              # full extent: always legal, avoids masked stores
    else:
        l_block = max_l          # odd large L: edge lane block is masked (perf cliff only)

    max_rows = max(sub, budget_elems // l_block)
    if R <= max_rows:
        r_block = R              # full extent
    else:
        r_block = max(sub, (max_rows // sub) * sub)

    # v7x megacore: guarantee >=2 blocks along a "parallel" axis so both TCs work.
    if ensure_two and pl.cdiv(R, r_block) * pl.cdiv(L, l_block) == 1:
        if R >= 2 * sub:
            r_block = max(sub, pl.cdiv(pl.cdiv(R, 2), sub) * sub)
        elif L % _LANE == 0 and L >= 2 * _LANE:
            l_block = max(_LANE, pl.cdiv(pl.cdiv(L, 2), _LANE) * _LANE)
    return r_block, l_block


def _normalization_forward(img, scale_c, bias_c, block_bytes, vmem_limit, ensure_two):
    N, C, H, W = img.shape
    R, L = N * C, H * W
    in_itemsize = jnp.dtype(img.dtype).itemsize
    # The PyTorch module returns float; never cast back to an integer input dtype.
    out_dtype = img.dtype if jnp.issubdtype(img.dtype, jnp.floating) else jnp.float32
    out_itemsize = jnp.dtype(out_dtype).itemsize

    # Per-row stats (row r -> channel r % C); tiny const-folded broadcast under jit.
    scale = jnp.tile(scale_c, N).reshape(R, 1)
    bias = jnp.tile(bias_c, N).reshape(R, 1)

    x2 = img.reshape(R, L)  # free, lane-dense layout (last dim -> lanes)

    r_block, l_block = _pick_blocks(R, L, in_itemsize, out_itemsize,
                                    block_bytes, ensure_two)
    # Lane axis (j) last/fastest: stat blocks (index_map (i, 0)) are not re-DMA'd
    # across the inner lane steps.  Do not reorder the grid.
    grid = (pl.cdiv(R, r_block), pl.cdiv(L, l_block))

    cost = pl.CostEstimate(
        flops=2 * R * L,
        transcendentals=0,
        bytes_accessed=R * L * (in_itemsize + out_itemsize) + 8 * R,
    )

    out2 = pl.pallas_call(
        _normalize_kernel,
        out_shape=jax.ShapeDtypeStruct((R, L), out_dtype),
        grid_spec=pltpu.PrefetchScalarGridSpec(
            num_scalar_prefetch=0,
            grid=grid,
            in_specs=[
                pl.BlockSpec((r_block, l_block), lambda i, j: (i, j)),
                pl.BlockSpec((r_block, 1), lambda i, j: (i, 0)),
                pl.BlockSpec((r_block, 1), lambda i, j: (i, 0)),
            ],
            out_specs=pl.BlockSpec((r_block, l_block), lambda i, j: (i, j)),
        ),
        compiler_params=pltpu.CompilerParams(
            dimension_semantics=("parallel", "parallel"),
            vmem_limit_bytes=vmem_limit,
        ),
        cost_estimate=cost,
    )(x2, scale, bias)

    return out2.reshape(N, C, H, W)


def make_normalization(mean, std):
    """Pallas equivalent of Normalization(mean, std).__call__.  Returns forward(img)."""
    mean32 = jnp.asarray(mean, jnp.float32).reshape(-1)
    std32 = jnp.asarray(std, jnp.float32).reshape(-1)
    # Hoisted to init: fold (x - mean)/std into x * (1/std) + (-mean/std).
    scale_c = 1.0 / std32
    bias_c = -mean32 / std32
    block_bytes, vmem_limit, ensure_two = _chip_config()

    @jax.jit
    def forward(img):
        return _normalization_forward(img, scale_c, bias_c,
                                      block_bytes, vmem_limit, ensure_two)

    return forward


if __name__ == "__main__":
    # Deterministic small example (the module's __init__ takes mean/std lists).
    N, C, H, W = 2, 3, 16, 16
    key = jax.random.PRNGKey(0)
    img = jax.random.uniform(key, (N, C, H, W), dtype=jnp.float32)

    # Classic ImageNet-style per-channel statistics (C = 3).
    mean = [0.485, 0.456, 0.406]
    std = [0.229, 0.224, 0.225]

    normalize = make_normalization(mean, std)
    out = jax.block_until_ready(normalize(img))

    # Reference check in plain JAX (same semantics as the PyTorch module).
    ref = (img - jnp.asarray(mean, jnp.float32).reshape(C, 1, 1)) \
          / jnp.asarray(std, jnp.float32).reshape(C, 1, 1)
    assert out.shape == (N, C, H, W)
    assert out.dtype == img.dtype
    # FMA formulation differs from a literal divide by a few f32 ulps.
    assert jnp.allclose(out, ref, atol=1e-5, rtol=1e-5)

    print("KERNEL_OK")
</pallas_src>

<mosaic_0001>
module attributes {stable_mosaic.version = 11 : i64} {
  func.func @_normalize_kernel(%arg0: i32, %arg1: i32, %arg2: memref<6x256xf32, #tpu.memory_space<vmem>>, %arg3: memref<6x1xf32, #tpu.memory_space<vmem>>, %arg4: memref<6x1xf32, #tpu.memory_space<vmem>>, %arg5: memref<6x256xf32, #tpu.memory_space<vmem>>) attributes {dimension_semantics = [#tpu.dimension_semantics<parallel>, #tpu.dimension_semantics<parallel>], iteration_bounds = array<i64: 1, 1>, scalar_prefetch = 0 : i64, scratch_operands = 0 : i64, tpu.core_type = #tpu.core_type<tc>, window_params = [{transform_indices = @transform_0, window_bounds = array<i64: 6, 256>}, {transform_indices = @transform_1, window_bounds = array<i64: 6, 1>}, {transform_indices = @transform_2, window_bounds = array<i64: 6, 1>}, {transform_indices = @transform_3, window_bounds = array<i64: 6, 256>}]} {
    %c0 = arith.constant 0 : index
    %c0_0 = arith.constant 0 : index
    %0 = vector.load %arg2[%c0, %c0_0] : memref<6x256xf32, #tpu.memory_space<vmem>>, vector<6x256xf32>
    %c0_1 = arith.constant 0 : index
    %c0_2 = arith.constant 0 : index
    %1 = vector.load %arg3[%c0_1, %c0_2] : memref<6x1xf32, #tpu.memory_space<vmem>>, vector<6x1xf32>
    %2 = vector.broadcast %1 : vector<6x1xf32> to vector<6x256xf32>
    %3 = arith.mulf %0, %2 : vector<6x256xf32>
    %c0_3 = arith.constant 0 : index
    %c0_4 = arith.constant 0 : index
    %4 = vector.load %arg4[%c0_3, %c0_4] : memref<6x1xf32, #tpu.memory_space<vmem>>, vector<6x1xf32>
    %5 = vector.broadcast %4 : vector<6x1xf32> to vector<6x256xf32>
    %6 = arith.addf %3, %5 : vector<6x256xf32>
    %c0_5 = arith.constant 0 : index
    %c0_6 = arith.constant 0 : index
    %7 = vector.load %arg5[%c0_5, %c0_6] : memref<6x256xf32, #tpu.memory_space<vmem>>, vector<6x256xf32>
    tpu.vector_store %arg5[%c0_5, %c0_6], %6 {strides = array<i32>} : memref<6x256xf32, #tpu.memory_space<vmem>>, vector<6x256xf32>,
    return
  }
  func.func @transform_0(%arg0: i32, %arg1: i32) -> (i32, i32) {
    %c0_i32 = arith.constant 0 : i32
    return %arg0, %arg1 : i32, i32
  }
  func.func @transform_1(%arg0: i32, %arg1: i32) -> (i32, i32) {
    %c0_i32 = arith.constant 0 : i32
    %c0_i32_0 = arith.constant 0 : i32
    return %arg0, %c0_i32 : i32, i32
  }
  func.func @transform_2(%arg0: i32, %arg1: i32) -> (i32, i32) {
    %c0_i32 = arith.constant 0 : i32
    %c0_i32_0 = arith.constant 0 : i32
    return %arg0, %c0_i32 : i32, i32
  }
  func.func @transform_3(%arg0: i32, %arg1: i32) -> (i32, i32) {
    %c0_i32 = arith.constant 0 : i32
    return %arg0, %arg1 : i32, i32
  }
}

</mosaic_0001>

<llo_original>
// kernel: tile.14
$region0: #{tile.14}
  #allocation0 [shape = 's32[1]{0}', space=sflag, size = 0x4, scoped, tag = 'scoped memory for tile.14']
  %s0 = inlined_call_operand.vmem [shape: f32[3], index: 0, kind: input, shape index: {}]
  %s1 = inlined_call_operand.vmem [shape: f32[2,3], index: 1, kind: output, shape index: {}]
  // Predicated region
  $region2: #{tile.14} parent=0 // pred_check
    _
  $region3: #{tile.14} parent=0 // pred_check_branch
    %3 = sbr.rel (0) target = $region5
  $region4: #{tile.14} parent=0 // pred_region
    _
  $region5: #{tile.14} parent=0 // pred_fallthru
    _
  %v4 = vld [vmem:[%s0] ss:$0 sm:$0xff]
  %5 = vst [vmem:[%s1] sm:$0x3] %v4

// kernel: tile.1
$region0: #{tile.1}
  %s0 = inlined_call_operand.vmem [shape: f32[2,3], index: 0, kind: input, shape index: {}]
  %s1 = inlined_call_operand.hbm [shape: f32[6,1], index: 1, kind: output, shape index: {}]
  $region1: #{tile.1} parent=0
    #allocation0 [shape = 'u8[4096]{0}', space=vmem, size = 0x1000, scoped, tag = 'operand span for operand 1']
    #allocation1 [shape = 's32[1]{0}', space=sflag, size = 0x4, scoped, tag = 'scoped memory for tile.1']
    #allocation2 [shape = 'u8[4096]{0}', space=vmem, size = 0x1000, scoped, tag = 'scoped mem for input reshape']
    %2 = vsyncpa [#allocation1], 0
    %s4 = sshllo.u32 0, 2
    %v5 = vld [vmem:[%s0] sm:%s4]
    %6 = vst [vmem:[#allocation2] sm:%s4] %v5
    %v7 = vld [vmem:[#allocation2] sm:$0x3]
    %vm8 = vcmask 7168
    %9 = vst.msk [vmem:[#allocation0] ss:$3 sm:$0x3] %vm8, %v7
    %v10 = vld [vmem:[#allocation2] sm:$0x3]
    %11 = vrot.lane.b32.xlu0 %v10, 127
    %v12 = vpop.permute.xlu0 %11
    %vm13 = vcmask 7168
    %s14 = scalar_lea.vmem [#allocation0], 1
    %15 = vst.msk [vmem:[%s14] ss:$3 sm:$0x3] %vm13, %v12
    %v16 = vld [vmem:[#allocation2] sm:$0x3]
    %17 = vrot.lane.b32.xlu0 %v16, 126
    %v18 = vpop.permute.xlu0 %17
    %vm19 = vcmask 7168
    %s20 = scalar_lea.vmem [#allocation0], 2
    %21 = vst.msk [vmem:[%s20] ss:$3 sm:$0x3] %vm19, %v18
    %s23 = ssub.s32 128, 128
    %24 = vsyncadd [#allocation1], %s23
    %s26 = sshll.u32 [#allocation0], 4
    %s27 = int_to_ptr.vmem [resolvable:$true] %s26
    %29 = dma.vmem_to_hbm [thread:$0]  %s27, 128, %s1, [#allocation1]
    %30 = dma.done [#allocation1], 128
    %31 = vsyncpa [#allocation1], 1

// kernel: forward.1
$region0: #{forward.1}
  #allocation0 [shape = 'u32[]', space=smem, size = 0x4, offset = 0x4, fixed_abs, tag = 'smem constant byte address 0x4 - core index']
  #allocation1 [shape = 'u32[144,128]{1,0:T(1,128)}', space=vmem, size = 0x12000, scoped, tag = 'internal scratch']
  %s0 = inlined_call_operand.hbm [shape: f32[6,256], index: 0, kind: input, shape index: {}]
  %s1 = inlined_call_operand.hbm [shape: f32[6,1], index: 1, kind: input, shape index: {}]
  %s2 = inlined_call_operand.hbm [shape: f32[6,1], index: 2, kind: input, shape index: {}]
  %s3 = inlined_call_operand.hbm [shape: f32[6,256], index: 3, kind: output, shape index: {}]
  %s4 = sld [smem:[#allocation0]]
  $region34: #{forward.1} parent=0
    _
  %s6 = ssub.s32 1, %s4
  %s7 = scalar_select 0, %s6, %s4
  $region1: #{forward.1} parent=0
    #allocation2 [shape = 'u8[8192]{0}', space=vmem, size = 0x2000, scoped, tag = 'input window, operand 0, single buffered']
    #allocation3 [shape = 's32[1]{0}', space=sflag, size = 0x4, scoped, tag = 'scoped memory for forward.1']
    #allocation4 [shape = 's32[1]{0}', space=sflag, size = 0x4, scoped, tag = 'scoped memory for forward.1']
    #allocation5 [shape = 'u8[4096]{0}', space=vmem, size = 0x1000, scoped, tag = 'input window, operand 1, single buffered']
    #allocation6 [shape = 's32[1]{0}', space=sflag, size = 0x4, scoped, tag = 'scoped memory for forward.1']
    #allocation7 [shape = 'u8[4096]{0}', space=vmem, size = 0x1000, scoped, tag = 'input window, operand 2, single buffered']
    #allocation8 [shape = 'u8[8192]{0}', space=vmem, size = 0x2000, scoped, tag = 'output window, operand 0, single buffered']
    %8 = vsyncpa [#allocation3], 0
    %9 = vsyncpa [#allocation6], 0
    %10 = vsyncpa [#allocation4], 0
    // Predicated region
    $region2: #{forward.1} parent=1 // pred_check
      _
    $region3: #{forward.1} parent=1 // pred_check_branch
      %12 = sbr.rel (0) target = $region5
    $region4: #{forward.1} parent=1 // pred_region
      %s14 = ssub.s32 256, 256
      %15 = vsyncadd [#allocation3], %s14
      %s17 = sshll.u32 [#allocation2], 4
      %s18 = int_to_ptr.vmem [resolvable:$true] %s17
      %20 = dma.hbm_to_vmem [thread:$0]  %s0, 256, %s18, [#allocation3]
    $region5: #{forward.1} parent=1 // pred_fallthru
      _
    // Predicated region
    $region6: #{forward.1} parent=1 // pred_check
      _
    $region7: #{forward.1} parent=1 // pred_check_branch
      %22 = sbr.rel (0) target = $region9
    $region8: #{forward.1} parent=1 // pred_region
      %s24 = ssub.s32 128, 128
      %25 = vsyncadd [#allocation6], %s24
      %s27 = sshll.u32 [#allocation5], 4
      %s28 = int_to_ptr.vmem [resolvable:$true] %s27
      %30 = dma.hbm_to_vmem [thread:$0]  %s1, 128, %s28, [#allocation6]
    $region9: #{forward.1} parent=1 // pred_fallthru
      _
    // Predicated region
    $region10: #{forward.1} parent=1 // pred_check
      _
    $region11: #{forward.1} parent=1 // pred_check_branch
      %32 = sbr.rel (0) target = $region13
    $region12: #{forward.1} parent=1 // pred_region
      %s34 = ssub.s32 128, 128
      %35 = vsyncadd [#allocation6], %s34
      %s37 = sshll.u32 [#allocation7], 4
      %s38 = int_to_ptr.vmem [resolvable:$true] %s37
      %40 = dma.hbm_to_vmem [thread:$0]  %s2, 128, %s38, [#allocation6]
    $region13: #{forward.1} parent=1 // pred_fallthru
      _
    // Predicated region
    $region14: #{forward.1} parent=1 // pred_check
      _
    $region15: #{forward.1} parent=1 // pred_check_branch
      %42 = sbr.rel (0) target = $region17
    $region16: #{forward.1} parent=1 // pred_region
      %43 = dma.done [#allocation3], 256
    $region17: #{forward.1} parent=1 // pred_fallthru
      _
    // Predicated region
    $region18: #{forward.1} parent=1 // pred_check
      _
    $region19: #{forward.1} parent=1 // pred_check_branch
      %45 = sbr.rel (0) target = $region21
    $region20: #{forward.1} parent=1 // pred_region
      %46 = dma.done [#allocation6], 128
    $region21: #{forward.1} parent=1 // pred_fallthru
      _
    // Predicated region
    $region22: #{forward.1} parent=1 // pred_check
      _
    $region23: #{forward.1} parent=1 // pred_check_branch
      %48 = sbr.rel (0) target = $region25
    $region24: #{forward.1} parent=1 // pred_region
      %49 = dma.done [#allocation6], 128
    $region25: #{forward.1} parent=1 // pred_fallthru
      _
    %v50 = vld [vmem:[#allocation2] sm:$0x3f]
    %v51 = vld [vmem:[#allocation2 + $0x8] sm:$0x3f]
    %v52 = vld [vmem:[#allocation5] sm:$0x3f]
    %54 = vset.pattern.permute.xlu0 0
    %55 = vperm.xlu0 %54, %v52
    %v56 = vpop.permute.xlu0 %55
    %v58 = vmul.f32 %v50, %v56
    %v59 = vmul.f32 %v51, %v56
    %v60 = vld [vmem:[#allocation7] sm:$0x3f]
    %62 = vset.pattern.permute.xlu0 0
    %63 = vperm.xlu0 %62, %v60
    %v64 = vpop.permute.xlu0 %63
    %v66 = vadd.f32 %v58, %v64
    %v67 = vadd.f32 %v59, %v64
    %68 = vst [vmem:[#allocation8] sm:$0x3f] %v66
    %69 = vst [vmem:[#allocation8 + $0x8] sm:$0x3f] %v67
    // Predicated region
    $region26: #{forward.1} parent=1 // pred_check
      _
    $region27: #{forward.1} parent=1 // pred_check_branch
      %71 = sbr.rel (0) target = $region29
    $region28: #{forward.1} parent=1 // pred_region
      %s73 = ssub.s32 256, 256
      %74 = vsyncadd [#allocation4], %s73
      %s76 = sshll.u32 [#allocation8], 4
      %s77 = int_to_ptr.vmem [resolvable:$true] %s76
      %79 = dma.vmem_to_hbm [thread:$0]  %s77, 256, %s3, [#allocation4]
    $region29: #{forward.1} parent=1 // pred_fallthru
      _
    // Predicated region
    $region30: #{forward.1} parent=1 // pred_check
      _
    $region31: #{forward.1} parent=1 // pred_check_branch
      %81 = sbr.rel (0) target = $region33
    $region32: #{forward.1} parent=1 // pred_region
      %82 = dma.done [#allocation4], 256
    $region33: #{forward.1} parent=1 // pred_fallthru
      _
    %83 = vsyncpa [#allocation3], 1
    %84 = vsyncpa [#allocation6], 1
    %85 = vsyncpa [#allocation4], 1

</llo_original>
